<compile_context>
chip_gen: v7x
topology: tpu7x:2x2x1
jax: 0.10.0
libtpu: 0.0.40
codegen_flags: <defaults>
</compile_context>

<pallas_src>
import math

import jax
import jax.numpy as jnp
from jax.experimental import pallas as pl
from jax.experimental.pallas import tpu as pltpu

# ---------------- config (small, consistent with the module) ----------------
B = 2             # batch
S = 8             # seq_len
H = 32            # hidden_size
NH = 4            # num_attention_heads
HD = H // NH      # head_dim = 8
I = 64            # intermediate_size
L = 2             # num_hidden_layers
V = 128           # vocab_size
EPS = 1e-6
NEG_INF = -1e9
SCALE = 1.0 / math.sqrt(HD)

NKV = NH * S          # 32: lane width of the all-head score slab
WROWS = 2 * H + I     # 128: rows of the per-layer packed weight slab
WCOLS = 4 * H         # 128: cols of the per-layer packed weight slab


# ------------------------------- Pallas kernel -------------------------------
def fused_layers_kernel(x_ref, cossin_ref, mask_ref, pkv_ref, w_ref, out_ref):
    """One (batch, layer) grid step of the NanoLlama decoder stack.

    x_ref      (1, S, H)        embedded tokens for this batch (used at layer 0)
    cossin_ref (S, 4H)=(8,128)  [cos_q|cos_k | sin_q|sin_k], rotary-permuted layout
    mask_ref   (1, S, NKV)      additive causal+padding mask tiled across heads
    pkv_ref    (NKV, 2H)        [P_k | P_v] block-diagonal head-membership patterns
    w_ref      (1, 128, 128)    per-layer packed weight slab (streamed over layers)
    out_ref    (1, S, H)        resident activation carry / final output
    """
    layer = pl.program_id(1)

    # Layer 0 of each batch: seed the resident activation with the input.
    @pl.when(layer == 0)
    def _():
        out_ref[...] = x_ref[...]

    x = out_ref[0]                                     # (S, H) carried activation

    # --- unpack the per-layer weight slab (static slices) ---
    wqkv = w_ref[0, 0:H, 0:3 * H]                      # (H, 3H)  [wq'*scale | wk' | wv]
    wo = w_ref[0, 0:H, 3 * H:4 * H]                    # (H, H)
    wgu = w_ref[0, H:2 * H, :]                         # (H, 2I)  [w_gate | w_up]
    wd = w_ref[0, 2 * H:, 0:H]                         # (I, H)
    ln1 = w_ref[0, 2 * H:2 * H + 1, H:2 * H]           # (1, H)
    ln2 = w_ref[0, 2 * H + 1:2 * H + 2, H:2 * H]       # (1, H)

    def rmsnorm(t, w):
        var = jnp.mean(t * t, axis=-1, keepdims=True)
        return t * jax.lax.rsqrt(var + EPS) * w

    # ---- attention ----
    xn = rmsnorm(x, ln1)
    qkv = jnp.dot(xn, wqkv, preferred_element_type=jnp.float32)    # (S, 3H)
    qk = qkv[:, :2 * H]        # (S, 2H) fused q|k in rotary-friendly column order
    v = qkv[:, 2 * H:]         # (S, H)

    # Rotary: wq/wk columns were permuted wrapper-side to [pair-even | pair-odd]
    # halves per projection, so the pair swap becomes a contiguous rotate-half
    # (slices + concat on VPU/XLU) instead of a P2 matmul on the MXU.
    hh = H // 2
    rh = jnp.concatenate(
        [-qk[:, hh:H], qk[:, :hh], -qk[:, H + hh:], qk[:, H:H + hh]], axis=1)
    qk_rot = qk * cossin_ref[:, :2 * H] + rh * cossin_ref[:, 2 * H:]
    q_rot = qk_rot[:, :H]      # 1/sqrt(HD) pre-folded into wq at pack time
    k_rot = qk_rot[:, H:]

    # All-head attention as three wide matmuls (no per-head loop, no scratch):
    #   scores  : q_rot (S,H)   x block-diag K -> (S, NKV)
    #   denoms  : e     (S,NKV) x P_v          -> (S, H)  per-head sums, lane-broadcast
    #   context : e     (S,NKV) x block-diag V -> (S, H)
    p_k = pkv_ref[:, :H]       # head membership of permuted q/k columns
    p_v = pkv_ref[:, H:]       # head membership of original v / ctx columns
    k_big = jnp.concatenate([k_rot] * NH, axis=0) * p_k            # (NKV, H)
    v_big = jnp.concatenate([v] * NH, axis=0) * p_v                # (NKV, H)

    s = jax.lax.dot_general(q_rot, k_big, (((1,), (1,)), ((), ())),
                            preferred_element_type=jnp.float32)    # (S, NKV)
    s = s + mask_ref[0]
    e = jnp.exp(s - jnp.max(s, axis=-1, keepdims=True))
    denom = jnp.dot(e, p_v, preferred_element_type=jnp.float32)    # (S, H)
    ctx = jnp.dot(e, v_big, preferred_element_type=jnp.float32)    # (S, H)
    ctx = ctx * pl.reciprocal(denom, approx=False)
    res1 = x + jnp.dot(ctx, wo, preferred_element_type=jnp.float32)

    # ---- SwiGLU MLP ----
    xn2 = rmsnorm(res1, ln2)
    gu = jnp.dot(xn2, wgu, preferred_element_type=jnp.float32)     # (S, 2I)
    gate = gu[:, :I]
    up = gu[:, I:]
    act = gate * jax.nn.sigmoid(gate) * up
    down = jnp.dot(act, wd, preferred_element_type=jnp.float32)

    out_ref[0] = res1 + down


# ---------------------------- wrapper-side packing ----------------------------
def _rope_tables():
    inv_freq = 1.0 / (10000.0 ** (jnp.arange(0, HD, 2, dtype=jnp.float32) / HD))
    theta = jnp.arange(S, dtype=jnp.float32)[:, None] * inv_freq[None, :]  # (S, HD/2)
    return jnp.cos(theta), jnp.sin(theta)


def _rotary_perm():
    # permuted column c <- original column sigma(c): all pair-even elements of
    # every head first, then all pair-odd elements (head-major inside halves).
    perm = []
    for c in range(H):
        half = c // (H // 2)
        p = c % (H // 2)
        head, j = divmod(p, HD // 2)
        perm.append(head * HD + 2 * j + half)
    return jnp.array(perm, dtype=jnp.int32)


def pack_params(params):
    cos_half, sin_half = _rope_tables()
    reps = (2 * H) // (HD // 2)
    cos2 = jnp.tile(cos_half, (1, reps))                           # (S, 2H)
    sin2 = jnp.tile(sin_half, (1, reps))
    cossin = jnp.concatenate([cos2, sin2], axis=1)                 # (S, 4H) = (8,128)

    # block-diagonal head-membership patterns for all-head attention
    row_head = jnp.arange(NKV) // S
    col_head_k = (jnp.arange(H) % (H // 2)) // (HD // 2)           # permuted q/k cols
    col_head_v = jnp.arange(H) // HD                               # original v/ctx cols
    p_k = (row_head[:, None] == col_head_k[None, :]).astype(jnp.float32)
    p_v = (row_head[:, None] == col_head_v[None, :]).astype(jnp.float32)
    pkv = jnp.concatenate([p_k, p_v], axis=1)                      # (NKV, 2H)

    perm = _rotary_perm()
    slabs = []
    for lp in params["layers"]:
        slab = jnp.zeros((WROWS, WCOLS), dtype=jnp.float32)
        slab = slab.at[0:H, 0:H].set((lp["wq"] * SCALE)[:, perm])
        slab = slab.at[0:H, H:2 * H].set(lp["wk"][:, perm])
        slab = slab.at[0:H, 2 * H:3 * H].set(lp["wv"])
        slab = slab.at[0:H, 3 * H:4 * H].set(lp["wo"])
        slab = slab.at[H:2 * H, 0:I].set(lp["wg"])
        slab = slab.at[H:2 * H, I:2 * I].set(lp["wu"])
        slab = slab.at[2 * H:, 0:H].set(lp["wd"])
        slab = slab.at[2 * H, H:2 * H].set(lp["ln1"])
        slab = slab.at[2 * H + 1, H:2 * H].set(lp["ln2"])
        slabs.append(slab)
    return {"cossin": cossin, "pkv": pkv, "w": jnp.stack(slabs, axis=0)}


def decoder_layers(x, attention_mask, packed):
    causal = jnp.where(jnp.arange(S)[:, None] >= jnp.arange(S)[None, :],
                       0.0, NEG_INF).astype(jnp.float32)            # (S, S)
    pad_add = jnp.where(attention_mask.astype(bool), 0.0,
                        -10000.0).astype(jnp.float32)               # (B, S)
    mask = jnp.tile(causal[None] + pad_add[:, None, :], (1, 1, NH))  # (B, S, NKV)

    grid_spec = pltpu.PrefetchScalarGridSpec(
        num_scalar_prefetch=0,
        grid=(B, L),
        in_specs=[
            pl.BlockSpec((1, S, H), lambda b, l: (b, 0, 0)),          # x
            pl.BlockSpec((S, 4 * H), lambda b, l: (0, 0)),            # cos|sin
            pl.BlockSpec((1, S, NKV), lambda b, l: (b, 0, 0)),        # mask
            pl.BlockSpec((NKV, 2 * H), lambda b, l: (0, 0)),          # P_k|P_v
            pl.BlockSpec((1, WROWS, WCOLS), lambda b, l: (l, 0, 0)),  # layer weights
        ],
        out_specs=pl.BlockSpec((1, S, H), lambda b, l: (b, 0, 0)),
    )
    return pl.pallas_call(
        fused_layers_kernel,
        out_shape=jax.ShapeDtypeStruct((B, S, H), jnp.float32),
        grid_spec=grid_spec,
        compiler_params=pltpu.CompilerParams(
            dimension_semantics=("parallel", "arbitrary")),
    )(x, packed["cossin"], mask, packed["pkv"], packed["w"])


def _rms_host(t, w):
    return t * jax.lax.rsqrt(jnp.mean(t * t, -1, keepdims=True) + EPS) * w


@jax.jit
def nano_llama_forward(input_ids, attention_mask, params, packed):
    # TODO(synk): embedding lookup, final norm, lm_head and CE loss are
    # host-side glue around the fused decoder-layer kernel.
    x = jnp.take(params["embed"], input_ids, axis=0)               # (B, S, H)
    h = decoder_layers(x, attention_mask, packed)
    hn = _rms_host(h, params["final_ln"])
    logits = jnp.dot(hn, params["lm_head"])                        # (B, S, V)
    return logits


# -------------------------- pure-JAX reference --------------------------
def reference_forward(input_ids, attention_mask, params):
    cos_half, sin_half = _rope_tables()
    x = jnp.take(params["embed"], input_ids, axis=0)
    causal = jnp.where(jnp.arange(S)[:, None] >= jnp.arange(S)[None, :],
                       0.0, NEG_INF).astype(jnp.float32)
    pad_add = jnp.where(attention_mask.astype(bool), 0.0, -10000.0)

    def rope(t):
        t2 = t.reshape(B, S, NH, HD // 2, 2)
        a, b = t2[..., 0], t2[..., 1]
        c = cos_half[None, :, None, :]
        s = sin_half[None, :, None, :]
        return jnp.stack([a * c - b * s, a * s + b * c], -1).reshape(B, S, NH, HD)

    for lp in params["layers"]:
        xn = _rms_host(x, lp["ln1"])
        q = (xn @ lp["wq"]).reshape(B, S, NH, HD)
        k = (xn @ lp["wk"]).reshape(B, S, NH, HD)
        v = (xn @ lp["wv"]).reshape(B, S, NH, HD)
        q, k = rope(q), rope(k)
        q = q.transpose(0, 2, 1, 3)
        k = k.transpose(0, 2, 1, 3)
        v = v.transpose(0, 2, 1, 3)
        scores = (q @ k.transpose(0, 1, 3, 2)) / math.sqrt(HD)
        scores = scores + pad_add[:, None, None, :] + causal[None, None]
        p = jax.nn.softmax(scores, axis=-1)
        ctx = (p @ v).transpose(0, 2, 1, 3).reshape(B, S, H)
        res1 = x + ctx @ lp["wo"]
        xn2 = _rms_host(res1, lp["ln2"])
        x = res1 + (jax.nn.silu(xn2 @ lp["wg"]) * (xn2 @ lp["wu"])) @ lp["wd"]

    hn = _rms_host(x, params["final_ln"])
    return hn @ params["lm_head"]


# ------------------------------ main ------------------------------
if __name__ == "__main__":
    key = jax.random.PRNGKey(0)
    keys = iter(jax.random.split(key, 64))

    def w(shape, scale=None):
        k = next(keys)
        if scale is None:
            scale = 1.0 / math.sqrt(shape[0])
        return jax.random.normal(k, shape, dtype=jnp.float32) * scale

    layers = []
    for _ in range(L):
        layers.append({
            "wq": w((H, H)), "wk": w((H, H)), "wv": w((H, H)), "wo": w((H, H)),
            "wg": w((H, I)), "wu": w((H, I)), "wd": w((I, H)),
            "ln1": 1.0 + 0.05 * jax.random.normal(next(keys), (H,), dtype=jnp.float32),
            "ln2": 1.0 + 0.05 * jax.random.normal(next(keys), (H,), dtype=jnp.float32),
        })
    params = {
        "embed": 0.5 * jax.random.normal(next(keys), (V, H), dtype=jnp.float32),
        "layers": layers,
        "final_ln": jnp.ones((H,), dtype=jnp.float32),
        "lm_head": w((H, V)),
    }

    input_ids = jax.random.randint(next(keys), (B, S), 0, V)
    # attention_mask: 1 = valid token, 0 = pad (batch 1 has 2 padded positions)
    attention_mask = jnp.array([[1] * S, [1] * (S - 2) + [0, 0]], dtype=jnp.int32)

    packed = pack_params(params)
    logits = nano_llama_forward(input_ids, attention_mask, params, packed)
    logits = jax.block_until_ready(logits)

    ref = reference_forward(input_ids, attention_mask, params)
    max_err = float(jnp.max(jnp.abs(logits - ref)))
    assert jnp.allclose(logits, ref, rtol=2e-4, atol=2e-4), max_err

    print("KERNEL_OK")
</pallas_src>

<mosaic_0001>
module attributes {stable_mosaic.version = 11 : i64} {
  func.func @fused_layers_kernel(%arg0: i32, %arg1: i32, %arg2: memref<1x8x32xf32, #tpu.memory_space<vmem>>, %arg3: memref<8x128xf32, #tpu.memory_space<vmem>>, %arg4: memref<1x8x32xf32, #tpu.memory_space<vmem>>, %arg5: memref<32x64xf32, #tpu.memory_space<vmem>>, %arg6: memref<1x128x128xf32, #tpu.memory_space<vmem>>, %arg7: memref<1x8x32xf32, #tpu.memory_space<vmem>>) attributes {dimension_semantics = [#tpu.dimension_semantics<parallel>, #tpu.dimension_semantics<arbitrary>], iteration_bounds = array<i64: 2, 2>, scalar_prefetch = 0 : i64, scratch_operands = 0 : i64, tpu.core_type = #tpu.core_type<tc>, window_params = [{transform_indices = @transform_0, window_bounds = array<i64: 1, 8, 32>}, {pipeline_mode = #tpu.pipeline_mode<synchronous>, transform_indices = @transform_1, window_bounds = array<i64: 8, 128>}, {transform_indices = @transform_2, window_bounds = array<i64: 1, 8, 32>}, {pipeline_mode = #tpu.pipeline_mode<synchronous>, transform_indices = @transform_3, window_bounds = array<i64: 32, 64>}, {transform_indices = @transform_4, window_bounds = array<i64: 1, 128, 128>}, {transform_indices = @transform_5, window_bounds = array<i64: 1, 8, 32>}]} {
    %c0_i32 = arith.constant 0 : i32
    %0 = arith.cmpi eq, %arg1, %c0_i32 : i32
    %1 = arith.extui %0 : i1 to i32
    %c0_i32_0 = arith.constant 0 : i32
    %2 = arith.cmpi ne, %1, %c0_i32_0 : i32
    scf.if %2 {
      %c0_47 = arith.constant 0 : index
      %c0_48 = arith.constant 0 : index
      %c0_49 = arith.constant 0 : index
      %96 = vector.load %arg2[%c0_47, %c0_48, %c0_49] : memref<1x8x32xf32, #tpu.memory_space<vmem>>, vector<1x8x32xf32>
      %c0_50 = arith.constant 0 : index
      %c0_51 = arith.constant 0 : index
      %c0_52 = arith.constant 0 : index
      %97 = vector.load %arg7[%c0_50, %c0_51, %c0_52] : memref<1x8x32xf32, #tpu.memory_space<vmem>>, vector<1x8x32xf32>
      tpu.vector_store %arg7[%c0_50, %c0_51, %c0_52], %96 {strides = array<i32>} : memref<1x8x32xf32, #tpu.memory_space<vmem>>, vector<1x8x32xf32>,
    } else {
    }
    %c0 = arith.constant 0 : index
    %c0_1 = arith.constant 0 : index
    %c0_2 = arith.constant 0 : index
    %3 = vector.load %arg7[%c0, %c0_1, %c0_2] : memref<1x8x32xf32, #tpu.memory_space<vmem>>, vector<1x8x32xf32>
    %4 = vector.shape_cast %3 : vector<1x8x32xf32> to vector<8x32xf32>
    %c0_3 = arith.constant 0 : index
    %c0_4 = arith.constant 0 : index
    %c0_5 = arith.constant 0 : index
    %5 = vector.load %arg6[%c0_3, %c0_4, %c0_5] : memref<1x128x128xf32, #tpu.memory_space<vmem>>, vector<1x32x96xf32>
    %6 = vector.shape_cast %5 : vector<1x32x96xf32> to vector<32x96xf32>
    %c0_6 = arith.constant 0 : index
    %c0_7 = arith.constant 0 : index
    %c96 = arith.constant 96 : index
    %7 = vector.load %arg6[%c0_6, %c0_7, %c96] : memref<1x128x128xf32, #tpu.memory_space<vmem>>, vector<1x32x32xf32>
    %8 = vector.shape_cast %7 : vector<1x32x32xf32> to vector<32x32xf32>
    %c0_8 = arith.constant 0 : index
    %c32 = arith.constant 32 : index
    %c0_9 = arith.constant 0 : index
    %9 = vector.load %arg6[%c0_8, %c32, %c0_9] : memref<1x128x128xf32, #tpu.memory_space<vmem>>, vector<1x32x128xf32>
    %10 = vector.shape_cast %9 : vector<1x32x128xf32> to vector<32x128xf32>
    %c0_10 = arith.constant 0 : index
    %c64 = arith.constant 64 : index
    %c0_11 = arith.constant 0 : index
    %11 = vector.load %arg6[%c0_10, %c64, %c0_11] : memref<1x128x128xf32, #tpu.memory_space<vmem>>, vector<1x64x32xf32>
    %12 = vector.shape_cast %11 : vector<1x64x32xf32> to vector<64x32xf32>
    %c0_12 = arith.constant 0 : index
    %c64_13 = arith.constant 64 : index
    %c32_14 = arith.constant 32 : index
    %13 = vector.load %arg6[%c0_12, %c64_13, %c32_14] : memref<1x128x128xf32, #tpu.memory_space<vmem>>, vector<1x1x32xf32>
    %14 = vector.shape_cast %13 : vector<1x1x32xf32> to vector<1x32xf32>
    %c0_15 = arith.constant 0 : index
    %c65 = arith.constant 65 : index
    %c32_16 = arith.constant 32 : index
    %15 = vector.load %arg6[%c0_15, %c65, %c32_16] : memref<1x128x128xf32, #tpu.memory_space<vmem>>, vector<1x1x32xf32>
    %16 = vector.shape_cast %15 : vector<1x1x32xf32> to vector<1x32xf32>
    %17 = arith.mulf %4, %4 : vector<8x32xf32>
    %cst = arith.constant dense<0.000000e+00> : vector<8xf32>
    %18 = vector.multi_reduction <add>, %17, %cst [1] : vector<8x32xf32> to vector<8xf32>
    %19 = vector.shape_cast %18 : vector<8xf32> to vector<8x1xf32>
    %cst_17 = arith.constant 3.200000e+01 : f32
    %20 = vector.broadcast %cst_17 : f32 to vector<8x1xf32>
    %21 = arith.divf %19, %20 : vector<8x1xf32>
    %cst_18 = arith.constant 9.99999997E-7 : f32
    %22 = vector.broadcast %cst_18 : f32 to vector<8x1xf32>
    %23 = arith.addf %21, %22 : vector<8x1xf32>
    %24 = math.rsqrt %23 : vector<8x1xf32>
    %25 = vector.broadcast %24 : vector<8x1xf32> to vector<8x32xf32>
    %26 = arith.mulf %4, %25 : vector<8x32xf32>
    %27 = vector.broadcast %14 : vector<1x32xf32> to vector<8x32xf32>
    %28 = arith.mulf %26, %27 : vector<8x32xf32>
    %cst_19 = arith.constant dense<0.000000e+00> : vector<8x96xf32>
    %29 = tpu.matmul %28, %6, %cst_19 {dimension_numbers = #tpu.dot_dimension_numbers<[1], [0], [0], [1], [0, 0, 1, 1], [], []>} : vector<8x32xf32>, vector<32x96xf32>, vector<8x96xf32> -> vector<8x96xf32>
    %30 = vector.extract_strided_slice %29 {offsets = [0, 0], sizes = [8, 64], strides = [1, 1]} : vector<8x96xf32> to vector<8x64xf32>
    %31 = vector.extract_strided_slice %29 {offsets = [0, 64], sizes = [8, 32], strides = [1, 1]} : vector<8x96xf32> to vector<8x32xf32>
    %32 = vector.extract_strided_slice %30 {offsets = [0, 16], sizes = [8, 16], strides = [1, 1]} : vector<8x64xf32> to vector<8x16xf32>
    %cst_20 = arith.constant 0.000000e+00 : f32
    %33 = vector.broadcast %cst_20 : f32 to vector<8x16xf32>
    %34 = arith.subf %33, %32 : vector<8x16xf32>
    %35 = vector.extract_strided_slice %30 {offsets = [0, 0], sizes = [8, 16], strides = [1, 1]} : vector<8x64xf32> to vector<8x16xf32>
    %36 = vector.extract_strided_slice %30 {offsets = [0, 48], sizes = [8, 16], strides = [1, 1]} : vector<8x64xf32> to vector<8x16xf32>
    %cst_21 = arith.constant 0.000000e+00 : f32
    %37 = vector.broadcast %cst_21 : f32 to vector<8x16xf32>
    %38 = arith.subf %37, %36 : vector<8x16xf32>
    %39 = vector.extract_strided_slice %30 {offsets = [0, 32], sizes = [8, 16], strides = [1, 1]} : vector<8x64xf32> to vector<8x16xf32>
    %40 = tpu.concatenate %34, %35, %38, %39 in 1 : vector<8x16xf32>, vector<8x16xf32>, vector<8x16xf32>, vector<8x16xf32> -> vector<8x64xf32>
    %c0_22 = arith.constant 0 : index
    %c0_23 = arith.constant 0 : index
    %41 = vector.load %arg3[%c0_22, %c0_23] : memref<8x128xf32, #tpu.memory_space<vmem>>, vector<8x64xf32>
    %42 = arith.mulf %30, %41 : vector<8x64xf32>
    %c0_24 = arith.constant 0 : index
    %c64_25 = arith.constant 64 : index
    %43 = vector.load %arg3[%c0_24, %c64_25] : memref<8x128xf32, #tpu.memory_space<vmem>>, vector<8x64xf32>
    %44 = arith.mulf %40, %43 : vector<8x64xf32>
    %45 = arith.addf %42, %44 : vector<8x64xf32>
    %46 = vector.extract_strided_slice %45 {offsets = [0, 0], sizes = [8, 32], strides = [1, 1]} : vector<8x64xf32> to vector<8x32xf32>
    %47 = vector.extract_strided_slice %45 {offsets = [0, 32], sizes = [8, 32], strides = [1, 1]} : vector<8x64xf32> to vector<8x32xf32>
    %c0_26 = arith.constant 0 : index
    %c0_27 = arith.constant 0 : index
    %48 = vector.load %arg5[%c0_26, %c0_27] : memref<32x64xf32, #tpu.memory_space<vmem>>, vector<32x32xf32>
    %c0_28 = arith.constant 0 : index
    %c32_29 = arith.constant 32 : index
    %49 = vector.load %arg5[%c0_28, %c32_29] : memref<32x64xf32, #tpu.memory_space<vmem>>, vector<32x32xf32>
    %50 = tpu.concatenate %47, %47, %47, %47 in 0 : vector<8x32xf32>, vector<8x32xf32>, vector<8x32xf32>, vector<8x32xf32> -> vector<32x32xf32>
    %51 = arith.mulf %50, %48 : vector<32x32xf32>
    %52 = tpu.concatenate %31, %31, %31, %31 in 0 : vector<8x32xf32>, vector<8x32xf32>, vector<8x32xf32>, vector<8x32xf32> -> vector<32x32xf32>
    %53 = arith.mulf %52, %49 : vector<32x32xf32>
    %cst_30 = arith.constant dense<0.000000e+00> : vector<8x32xf32>
    %54 = tpu.matmul %46, %51, %cst_30 {dimension_numbers = #tpu.dot_dimension_numbers<[1], [1], [0], [0], [0, 0, 1, 0], [], []>} : vector<8x32xf32>, vector<32x32xf32>, vector<8x32xf32> -> vector<8x32xf32>
    %c0_31 = arith.constant 0 : index
    %c0_32 = arith.constant 0 : index
    %c0_33 = arith.constant 0 : index
    %55 = vector.load %arg4[%c0_31, %c0_32, %c0_33] : memref<1x8x32xf32, #tpu.memory_space<vmem>>, vector<1x8x32xf32>
    %56 = vector.shape_cast %55 : vector<1x8x32xf32> to vector<8x32xf32>
    %57 = arith.addf %54, %56 : vector<8x32xf32>
    %cst_34 = arith.constant dense<0xFF800000> : vector<8xf32>
    %58 = vector.multi_reduction <maximumf>, %57, %cst_34 [1] : vector<8x32xf32> to vector<8xf32>
    %59 = vector.shape_cast %58 : vector<8xf32> to vector<8x1xf32>
    %60 = vector.broadcast %59 : vector<8x1xf32> to vector<8x32xf32>
    %61 = arith.subf %57, %60 : vector<8x32xf32>
    %62 = math.exp %61 : vector<8x32xf32>
    %cst_35 = arith.constant dense<0.000000e+00> : vector<8x32xf32>
    %63 = tpu.matmul %62, %49, %cst_35 {dimension_numbers = #tpu.dot_dimension_numbers<[1], [0], [0], [1], [0, 0, 1, 1], [], []>} : vector<8x32xf32>, vector<32x32xf32>, vector<8x32xf32> -> vector<8x32xf32>
    %cst_36 = arith.constant dense<0.000000e+00> : vector<8x32xf32>
    %64 = tpu.matmul %62, %53, %cst_36 {dimension_numbers = #tpu.dot_dimension_numbers<[1], [0], [0], [1], [0, 0, 1, 1], [], []>} : vector<8x32xf32>, vector<32x32xf32>, vector<8x32xf32> -> vector<8x32xf32>
    %65 = tpu.reciprocal %63 : vector<8x32xf32> -> vector<8x32xf32>
    %66 = arith.mulf %64, %65 : vector<8x32xf32>
    %cst_37 = arith.constant dense<0.000000e+00> : vector<8x32xf32>
    %67 = tpu.matmul %66, %8, %cst_37 {dimension_numbers = #tpu.dot_dimension_numbers<[1], [0], [0], [1], [0, 0, 1, 1], [], []>} : vector<8x32xf32>, vector<32x32xf32>, vector<8x32xf32> -> vector<8x32xf32>
    %68 = arith.addf %4, %67 : vector<8x32xf32>
    %69 = arith.mulf %68, %68 : vector<8x32xf32>
    %cst_38 = arith.constant dense<0.000000e+00> : vector<8xf32>
    %70 = vector.multi_reduction <add>, %69, %cst_38 [1] : vector<8x32xf32> to vector<8xf32>
    %71 = vector.shape_cast %70 : vector<8xf32> to vector<8x1xf32>
    %cst_39 = arith.constant 3.200000e+01 : f32
    %72 = vector.broadcast %cst_39 : f32 to vector<8x1xf32>
    %73 = arith.divf %71, %72 : vector<8x1xf32>
    %cst_40 = arith.constant 9.99999997E-7 : f32
    %74 = vector.broadcast %cst_40 : f32 to vector<8x1xf32>
    %75 = arith.addf %73, %74 : vector<8x1xf32>
    %76 = math.rsqrt %75 : vector<8x1xf32>
    %77 = vector.broadcast %76 : vector<8x1xf32> to vector<8x32xf32>
    %78 = arith.mulf %68, %77 : vector<8x32xf32>
    %79 = vector.broadcast %16 : vector<1x32xf32> to vector<8x32xf32>
    %80 = arith.mulf %78, %79 : vector<8x32xf32>
    %cst_41 = arith.constant dense<0.000000e+00> : vector<8x128xf32>
    %81 = tpu.matmul %80, %10, %cst_41 {dimension_numbers = #tpu.dot_dimension_numbers<[1], [0], [0], [1], [0, 0, 1, 1], [], []>} : vector<8x32xf32>, vector<32x128xf32>, vector<8x128xf32> -> vector<8x128xf32>
    %82 = vector.extract_strided_slice %81 {offsets = [0, 0], sizes = [8, 64], strides = [1, 1]} : vector<8x128xf32> to vector<8x64xf32>
    %83 = vector.extract_strided_slice %81 {offsets = [0, 64], sizes = [8, 64], strides = [1, 1]} : vector<8x128xf32> to vector<8x64xf32>
    %84 = arith.negf %82 : vector<8x64xf32>
    %85 = math.exp %84 : vector<8x64xf32>
    %cst_42 = arith.constant 1.000000e+00 : f32
    %86 = vector.broadcast %cst_42 : f32 to vector<8x64xf32>
    %87 = arith.addf %86, %85 : vector<8x64xf32>
    %88 = arith.divf %86, %87 : vector<8x64xf32>
    %89 = arith.mulf %82, %88 : vector<8x64xf32>
    %90 = arith.mulf %89, %83 : vector<8x64xf32>
    %cst_43 = arith.constant dense<0.000000e+00> : vector<8x32xf32>
    %91 = tpu.matmul %90, %12, %cst_43 {dimension_numbers = #tpu.dot_dimension_numbers<[1], [0], [0], [1], [0, 0, 1, 1], [], []>} : vector<8x64xf32>, vector<64x32xf32>, vector<8x32xf32> -> vector<8x32xf32>
    %92 = arith.addf %68, %91 : vector<8x32xf32>
    %c0_44 = arith.constant 0 : index
    %c0_45 = arith.constant 0 : index
    %c0_46 = arith.constant 0 : index
    %93 = vector.load %arg7[%c0_44, %c0_45, %c0_46] : memref<1x8x32xf32, #tpu.memory_space<vmem>>, vector<1x8x32xf32>
    %94 = vector.shape_cast %93 : vector<1x8x32xf32> to vector<8x32xf32>
    %95 = vector.shape_cast %92 : vector<8x32xf32> to vector<1x8x32xf32>
    tpu.vector_store %arg7[%c0_44, %c0_45, %c0_46], %95 {strides = array<i32>} : memref<1x8x32xf32, #tpu.memory_space<vmem>>, vector<1x8x32xf32>,
    return
  }
  func.func @transform_0(%arg0: i32, %arg1: i32) -> (i32, i32, i32) {
    %c0_i32 = arith.constant 0 : i32
    %c0_i32_0 = arith.constant 0 : i32
    %c0_i32_1 = arith.constant 0 : i32
    return %arg0, %c0_i32, %c0_i32_0 : i32, i32, i32
  }
  func.func @transform_1(%arg0: i32, %arg1: i32) -> (i32, i32) {
    %c0_i32 = arith.constant 0 : i32
    %c0_i32_0 = arith.constant 0 : i32
    %c0_i32_1 = arith.constant 0 : i32
    return %c0_i32, %c0_i32_0 : i32, i32
  }
  func.func @transform_2(%arg0: i32, %arg1: i32) -> (i32, i32, i32) {
    %c0_i32 = arith.constant 0 : i32
    %c0_i32_0 = arith.constant 0 : i32
    %c0_i32_1 = arith.constant 0 : i32
    return %arg0, %c0_i32, %c0_i32_0 : i32, i32, i32
  }
  func.func @transform_3(%arg0: i32, %arg1: i32) -> (i32, i32) {
    %c0_i32 = arith.constant 0 : i32
    %c0_i32_0 = arith.constant 0 : i32
    %c0_i32_1 = arith.constant 0 : i32
    return %c0_i32, %c0_i32_0 : i32, i32
  }
  func.func @transform_4(%arg0: i32, %arg1: i32) -> (i32, i32, i32) {
    %c0_i32 = arith.constant 0 : i32
    %c0_i32_0 = arith.constant 0 : i32
    %c0_i32_1 = arith.constant 0 : i32
    return %arg1, %c0_i32, %c0_i32_0 : i32, i32, i32
  }
  func.func @transform_5(%arg0: i32, %arg1: i32) -> (i32, i32, i32) {
    %c0_i32 = arith.constant 0 : i32
    %c0_i32_0 = arith.constant 0 : i32
    %c0_i32_1 = arith.constant 0 : i32
    return %arg0, %c0_i32, %c0_i32_0 : i32, i32, i32
  }
}

</mosaic_0001>

<llo_original>
// kernel: tile.9
$region0: #{tile.9}
  %s0 = inlined_call_operand.vmem [shape: f32[2,8,4,8], index: 0, kind: input, shape index: {}]
  %s1 = inlined_call_operand.vmem [shape: f32[2,8,32], index: 1, kind: output, shape index: {}]
  $region1: #{tile.9} parent=0
    #allocation0 [shape = 'u8[65536]{0}', space=vmem, size = 0x10000, scoped, tag = 'scoped mem for input reshape']
    %s3 = sshllo.u32 0, 4
    %s4 = smul.addr 4, 15
    %s5 = scalar_lea.vmem %s0, %s4
    %v6 = vld [vmem:[%s5] sm:%s3]
    %s7 = scalar_lea.vmem [#allocation0], 120
    %8 = vst [vmem:[%s7] sm:%s3] %v6
    %s9 = smul.addr 4, 14
    %s10 = scalar_lea.vmem %s0, %s9
    %v11 = vld [vmem:[%s10] sm:%s3]
    %s12 = scalar_lea.vmem [#allocation0], 112
    %13 = vst [vmem:[%s12] sm:%s3] %v11
    %s14 = smul.addr 4, 13
    %s15 = scalar_lea.vmem %s0, %s14
    %v16 = vld [vmem:[%s15] sm:%s3]
    %s17 = scalar_lea.vmem [#allocation0], 104
    %18 = vst [vmem:[%s17] sm:%s3] %v16
    %s19 = smul.addr 4, 12
    %s20 = scalar_lea.vmem %s0, %s19
    %v21 = vld [vmem:[%s20] sm:%s3]
    %s22 = scalar_lea.vmem [#allocation0], 96
    %23 = vst [vmem:[%s22] sm:%s3] %v21
    %s24 = smul.addr 4, 11
    %s25 = scalar_lea.vmem %s0, %s24
    %v26 = vld [vmem:[%s25] sm:%s3]
    %s27 = scalar_lea.vmem [#allocation0], 88
    %28 = vst [vmem:[%s27] sm:%s3] %v26
    %s29 = smul.addr 4, 10
    %s30 = scalar_lea.vmem %s0, %s29
    %v31 = vld [vmem:[%s30] sm:%s3]
    %s32 = scalar_lea.vmem [#allocation0], 80
    %33 = vst [vmem:[%s32] sm:%s3] %v31
    %s34 = smul.addr 4, 9
    %s35 = scalar_lea.vmem %s0, %s34
    %v36 = vld [vmem:[%s35] sm:%s3]
    %s37 = scalar_lea.vmem [#allocation0], 72
    %38 = vst [vmem:[%s37] sm:%s3] %v36
    %s39 = smul.addr 4, 8
    %s40 = scalar_lea.vmem %s0, %s39
    %v41 = vld [vmem:[%s40] sm:%s3]
    %s42 = scalar_lea.vmem [#allocation0], 64
    %43 = vst [vmem:[%s42] sm:%s3] %v41
    %s44 = smul.addr 4, 7
    %s45 = scalar_lea.vmem %s0, %s44
    %v46 = vld [vmem:[%s45] sm:%s3]
    %s47 = scalar_lea.vmem [#allocation0], 56
    %48 = vst [vmem:[%s47] sm:%s3] %v46
    %s49 = smul.addr 4, 6
    %s50 = scalar_lea.vmem %s0, %s49
    %v51 = vld [vmem:[%s50] sm:%s3]
    %s52 = scalar_lea.vmem [#allocation0], 48
    %53 = vst [vmem:[%s52] sm:%s3] %v51
    %s54 = smul.addr 4, 5
    %s55 = scalar_lea.vmem %s0, %s54
    %v56 = vld [vmem:[%s55] sm:%s3]
    %s57 = scalar_lea.vmem [#allocation0], 40
    %58 = vst [vmem:[%s57] sm:%s3] %v56
    %s59 = smul.addr 4, 4
    %s60 = scalar_lea.vmem %s0, %s59
    %v61 = vld [vmem:[%s60] sm:%s3]
    %s62 = scalar_lea.vmem [#allocation0], 32
    %63 = vst [vmem:[%s62] sm:%s3] %v61
    %s64 = smul.addr 4, 3
    %s65 = scalar_lea.vmem %s0, %s64
    %v66 = vld [vmem:[%s65] sm:%s3]
    %s67 = scalar_lea.vmem [#allocation0], 24
    %68 = vst [vmem:[%s67] sm:%s3] %v66
    %s69 = smul.addr 4, 2
    %s70 = scalar_lea.vmem %s0, %s69
    %v71 = vld [vmem:[%s70] sm:%s3]
    %s72 = scalar_lea.vmem [#allocation0], 16
    %73 = vst [vmem:[%s72] sm:%s3] %v71
    %s74 = scalar_lea.vmem %s0, 4
    %v75 = vld [vmem:[%s74] sm:%s3]
    %s76 = scalar_lea.vmem [#allocation0], 8
    %77 = vst [vmem:[%s76] sm:%s3] %v75
    %v78 = vld [vmem:[%s0] sm:%s3]
    %79 = vst [vmem:[#allocation0] sm:%s3] %v78
    %v80 = vld [vmem:[#allocation0] ss:$8 sm:$0xf]
    %v81 = vld [vmem:[#allocation0] ss:$8 sm:$0xf0]
    %vm82 = vcmask 1047556
    %v83 = vsel %vm82, %v81, %v80
    %vm84 = vcmask 64512
    %85 = vst.msk [vmem:[%s1] sm:$0xff] %vm84, %v83
    %s86 = scalar_lea.vmem [#allocation0], 64
    %v87 = vld [vmem:[%s86] ss:$8 sm:$0xf]
    %s88 = scalar_lea.vmem [#allocation0], 64
    %v89 = vld [vmem:[%s88] ss:$8 sm:$0xf0]
    %vm90 = vcmask 1047556
    %v91 = vsel %vm90, %v89, %v87
    %vm92 = vcmask 64512
    %s93 = scalar_lea.vmem %s1, 8
    %94 = vst.msk [vmem:[%s93] sm:$0xff] %vm92, %v91
    %s95 = scalar_lea.vmem [#allocation0], 3
    %v96 = vld [vmem:[%s95] ss:$8 sm:$0xf]
    %s97 = scalar_lea.vmem [#allocation0], 3
    %v98 = vld [vmem:[%s97] ss:$8 sm:$0xf0]
    %vm99 = vcmask 1047556
    %v100 = vsel %vm99, %v98, %v96
    %101 = vrot.lane.b32.xlu0 %v100, 24
    %v102 = vpop.permute.xlu0 %101
    %vm103 = vcmask 261312
    %104 = vst.msk [vmem:[%s1] sm:$0xff] %vm103, %v102
    %s105 = scalar_lea.vmem [#allocation0], 67
    %v106 = vld [vmem:[%s105] ss:$8 sm:$0xf]
    %s107 = scalar_lea.vmem [#allocation0], 67
    %v108 = vld [vmem:[%s107] ss:$8 sm:$0xf0]
    %vm109 = vcmask 1047556
    %v110 = vsel %vm109, %v108, %v106
    %111 = vrot.lane.b32.xlu0 %v110, 24
    %v112 = vpop.permute.xlu0 %111
    %vm113 = vcmask 261312
    %s114 = scalar_lea.vmem %s1, 8
    %115 = vst.msk [vmem:[%s114] sm:$0xff] %vm113, %v112
    %s116 = scalar_lea.vmem [#allocation0], 2
    %v117 = vld [vmem:[%s116] ss:$8 sm:$0xf]
    %s118 = scalar_lea.vmem [#allocation0], 2
    %v119 = vld [vmem:[%s118] ss:$8 sm:$0xf0]
    %vm120 = vcmask 1047556
    %v121 = vsel %vm120, %v119, %v117
    %122 = vrot.lane.b32.xlu0 %v121, 16
    %v123 = vpop.permute.xlu0 %122
    %vm124 = vcmask 195712
    %125 = vst.msk [vmem:[%s1] sm:$0xff] %vm124, %v123
    %s126 = scalar_lea.vmem [#allocation0], 66
    %v127 = vld [vmem:[%s126] ss:$8 sm:$0xf]
    %s128 = scalar_lea.vmem [#allocation0], 66
    %v129 = vld [vmem:[%s128] ss:$8 sm:$0xf0]
    %vm130 = vcmask 1047556
    %v131 = vsel %vm130, %v129, %v127
    %132 = vrot.lane.b32.xlu0 %v131, 16
    %v133 = vpop.permute.xlu0 %132
    %vm134 = vcmask 195712
    %s135 = scalar_lea.vmem %s1, 8
    %136 = vst.msk [vmem:[%s135] sm:$0xff] %vm134, %v133
    %s137 = scalar_lea.vmem [#allocation0], 1
    %v138 = vld [vmem:[%s137] ss:$8 sm:$0xf]
    %s139 = scalar_lea.vmem [#allocation0], 1
    %v140 = vld [vmem:[%s139] ss:$8 sm:$0xf0]
    %vm141 = vcmask 1047556
    %v142 = vsel %vm141, %v140, %v138
    %143 = vrot.lane.b32.xlu0 %v142, 8
    %v144 = vpop.permute.xlu0 %143
    %vm145 = vcmask 130112
    %146 = vst.msk [vmem:[%s1] sm:$0xff] %vm145, %v144
    %s147 = scalar_lea.vmem [#allocation0], 65
    %v148 = vld [vmem:[%s147] ss:$8 sm:$0xf]
    %s149 = scalar_lea.vmem [#allocation0], 65
    %v150 = vld [vmem:[%s149] ss:$8 sm:$0xf0]
    %vm151 = vcmask 1047556
    %v152 = vsel %vm151, %v150, %v148
    %153 = vrot.lane.b32.xlu0 %v152, 8
    %v154 = vpop.permute.xlu0 %153
    %vm155 = vcmask 130112
    %s156 = scalar_lea.vmem %s1, 8
    %157 = vst.msk [vmem:[%s156] sm:$0xff] %vm155, %v154

// kernel: nano_llama_forward.1
$region0: #{nano_llama_forward.1}
  #allocation0 [shape = 'u32[]', space=smem, size = 0x4, offset = 0x4, fixed_abs, tag = 'smem constant byte address 0x4 - core index']
  #allocation1 [shape = 'u32[144,128]{1,0:T(1,128)}', space=vmem, size = 0x12000, scoped, tag = 'internal scratch']
  %s0 = inlined_call_operand.vmem [shape: f32[2,8,32], index: 0, kind: input, shape index: {}]
  %s1 = inlined_call_operand.vmem [shape: f32[8,128], index: 1, kind: input, shape index: {}]
  %s2 = inlined_call_operand.vmem [shape: f32[2,8,32], index: 2, kind: input, shape index: {}]
  %s3 = inlined_call_operand.vmem [shape: f32[32,64], index: 3, kind: input, shape index: {}]
  %s4 = inlined_call_operand.vmem [shape: f32[2,128,128], index: 4, kind: input, shape index: {}]
  %s5 = inlined_call_operand.vmem [shape: f32[2,8,32], index: 5, kind: output, shape index: {}]
  %s6 = sld [smem:[#allocation0]]
  $region57: #{nano_llama_forward.1} parent=0
    _
  %s8 = ssub.s32 1, %s6
  %s9 = scalar_select 0, %s8, %s6
  loop: start=0, step=1, limit=6
  $region2: #{nano_llama_forward.1} parent=0 // loop_pre_header
    _
  $region3: #{nano_llama_forward.1} parent=0 // loop_header
    %s11 = sphi 0, %s15
    %p12 = scmp.ge.s32.totalorder %s11, 6
    %s18 = sphi 0, %s30
    %s19 = sphi 0, %s26
    %s20 = sphi 0, %s18
    %s21 = sphi 0, %s19
    %s22 = sphi 0, %s20
    %s23 = sphi 0, %s21
    %s33 = sphi 0, %s35
    %s36 = sphi 0, %s33
    %s37 = sphi 0, %s36
    %s53 = sphi 0, %s37
    %s57 = sphi 0, %s57
    %s59 = sphi 0, %s57
    %s60 = sphi 0, %s59
    %s74 = sphi 0, %s60
    %s80 = sphi 0, %s82
    %s83 = sphi 0, %s80
    %s84 = sphi 0, %s83
    %s100 = sphi 0, %s84
    %s104 = sphi 0, %s104
    %s106 = sphi 0, %s104
    %s107 = sphi 0, %s106
    %s121 = sphi 0, %s107
    %s127 = sphi 0, %s129
    %s130 = sphi 0, %s127
    %s131 = sphi 0, %s130
    %s147 = sphi 0, %s131
    %s153 = sphi 0, %s155
    %s156 = sphi 0, %s153
    %s157 = sphi 0, %s156
    %s173 = sphi 0, %s157
  $region4: #{nano_llama_forward.1} parent=0 // loop_header_branch
    %14 = sbr.rel (%p12) target = $region8
  $region5: #{nano_llama_forward.1} parent=0 // loop_body
    %s16 = ssub.s32 %s11, 1
    %s17 = ssub.s32 %s11, 2
    %s24 = sadd.s32 1, %s19
    %p25 = scmp.ge.s32.totalorder %s24, 2
    %s26 = scalar_select %p25, 0, %s24
    %s27 = sadd.s32 1, %s18
    %s28 = scalar_select %p25, %s27, %s18
    %p29 = scmp.ge.s32.totalorder %s28, 2
    %s30 = scalar_select %p29, 0, %s28
    %s31 = ssub.s32 %s18, %s30
    %p32 = scmp.eq.s32.totalorder %s31, 0
    %s34 = sadd.s32 %s33, 1
    %s35 = scalar_select %p32, %s33, %s34
    %p38 = pneg %p32
    %p39 = scmp.eq.s32.totalorder %s11, 3
    %p40 = por %p38, %p39
    %p41 = scmp.ne.s32.totalorder %s33, %s36
    %p42 = scmp.eq.s32.totalorder %s11, 0
    %p43 = por %p41, %p42
    %p44 = scmp.ne.s32.totalorder %s33, %s36
    %p45 = scmp.eq.s32.totalorder %s16, 3
    %p46 = por %p44, %p45
    %p47 = scmp.ne.s32.totalorder %s36, %s37
    %p48 = scmp.eq.s32.totalorder %s16, 0
    %p49 = por %p47, %p48
    %p50 = scmp.ne.s32.totalorder %s36, %s37
    %p51 = scmp.eq.s32.totalorder %s17, 3
    %p52 = por %p50, %p51
    %p54 = scmp.ne.s32.totalorder %s37, %s53
    %p55 = scmp.eq.s32.totalorder %s17, 0
    %p56 = por %p54, %p55
    %s58 = sadd.s32 %s57, 1
    %p61 = scmp.eq.s32.totalorder %s11, 3
    %p62 = scmp.ne.s32.totalorder %s57, %s59
    %p63 = scmp.eq.s32.totalorder %s11, 0
    %p64 = por %p62, %p63
    %p65 = scmp.ne.s32.totalorder %s57, %s59
    %p66 = scmp.eq.s32.totalorder %s16, 3
    %p67 = por %p65, %p66
    %p68 = scmp.ne.s32.totalorder %s59, %s60
    %p69 = scmp.eq.s32.totalorder %s16, 0
    %p70 = por %p68, %p69
    %p71 = scmp.ne.s32.totalorder %s59, %s60
    %p72 = scmp.eq.s32.totalorder %s17, 3
    %p73 = por %p71, %p72
    %p75 = scmp.ne.s32.totalorder %s60, %s74
    %p76 = scmp.eq.s32.totalorder %s17, 0
    %p77 = por %p75, %p76
    %s78 = ssub.s32 %s18, %s30
    %p79 = scmp.eq.s32.totalorder %s78, 0
    %s81 = sadd.s32 %s80, 1
    %s82 = scalar_select %p79, %s80, %s81
    %p85 = pneg %p79
    %p86 = scmp.eq.s32.totalorder %s11, 3
    %p87 = por %p85, %p86
    %p88 = scmp.ne.s32.totalorder %s80, %s83
    %p89 = scmp.eq.s32.totalorder %s11, 0
    %p90 = por %p88, %p89
    %p91 = scmp.ne.s32.totalorder %s80, %s83
    %p92 = scmp.eq.s32.totalorder %s16, 3
    %p93 = por %p91, %p92
    %p94 = scmp.ne.s32.totalorder %s83, %s84
    %p95 = scmp.eq.s32.totalorder %s16, 0
    %p96 = por %p94, %p95
    %p97 = scmp.ne.s32.totalorder %s83, %s84
    %p98 = scmp.eq.s32.totalorder %s17, 3
    %p99 = por %p97, %p98
    %p101 = scmp.ne.s32.totalorder %s84, %s100
    %p102 = scmp.eq.s32.totalorder %s17, 0
    %p103 = por %p101, %p102
    %s105 = sadd.s32 %s104, 1
    %p108 = scmp.eq.s32.totalorder %s11, 3
    %p109 = scmp.ne.s32.totalorder %s104, %s106
    %p110 = scmp.eq.s32.totalorder %s11, 0
    %p111 = por %p109, %p110
    %p112 = scmp.ne.s32.totalorder %s104, %s106
    %p113 = scmp.eq.s32.totalorder %s16, 3
    %p114 = por %p112, %p113
    %p115 = scmp.ne.s32.totalorder %s106, %s107
    %p116 = scmp.eq.s32.totalorder %s16, 0
    %p117 = por %p115, %p116
    %p118 = scmp.ne.s32.totalorder %s106, %s107
    %p119 = scmp.eq.s32.totalorder %s17, 3
    %p120 = por %p118, %p119
    %p122 = scmp.ne.s32.totalorder %s107, %s121
    %p123 = scmp.eq.s32.totalorder %s17, 0
    %p124 = por %p122, %p123
    %s125 = ssub.s32 %s19, %s26
    %p126 = scmp.eq.s32.totalorder %s125, 0
    %s128 = sadd.s32 %s127, 1
    %s129 = scalar_select %p126, %s127, %s128
    %p132 = pneg %p126
    %p133 = scmp.eq.s32.totalorder %s11, 3
    %p134 = por %p132, %p133
    %p135 = scmp.ne.s32.totalorder %s127, %s130
    %p136 = scmp.eq.s32.totalorder %s11, 0
    %p137 = por %p135, %p136
    %p138 = scmp.ne.s32.totalorder %s127, %s130
    %p139 = scmp.eq.s32.totalorder %s16, 3
    %p140 = por %p138, %p139
    %p141 = scmp.ne.s32.totalorder %s130, %s131
    %p142 = scmp.eq.s32.totalorder %s16, 0
    %p143 = por %p141, %p142
    %p144 = scmp.ne.s32.totalorder %s130, %s131
    %p145 = scmp.eq.s32.totalorder %s17, 3
    %p146 = por %p144, %p145
    %p148 = scmp.ne.s32.totalorder %s131, %s147
    %p149 = scmp.eq.s32.totalorder %s17, 0
    %p150 = por %p148, %p149
    %s151 = ssub.s32 %s18, %s30
    %p152 = scmp.eq.s32.totalorder %s151, 0
    %s154 = sadd.s32 %s153, 1
    %s155 = scalar_select %p152, %s153, %s154
    %p158 = pneg %p152
    %p159 = scmp.eq.s32.totalorder %s11, 3
    %p160 = por %p158, %p159
    %p161 = scmp.ne.s32.totalorder %s153, %s156
    %p162 = scmp.eq.s32.totalorder %s11, 0
    %p163 = por %p161, %p162
    %p164 = scmp.ne.s32.totalorder %s153, %s156
    %p165 = scmp.eq.s32.totalorder %s16, 3
    %p166 = por %p164, %p165
    %p167 = scmp.ne.s32.totalorder %s156, %s157
    %p168 = scmp.eq.s32.totalorder %s16, 0
    %p169 = por %p167, %p168
    %p170 = scmp.ne.s32.totalorder %s156, %s157
    %p171 = scmp.eq.s32.totalorder %s17, 3
    %p172 = por %p170, %p171
    %p174 = scmp.ne.s32.totalorder %s157, %s173
    %p175 = scmp.eq.s32.totalorder %s17, 0
    %p176 = por %p174, %p175
    %p177 = scmp.le.s32.totalorder 1, %s11
    %p178 = scmp.lt.s32.totalorder %s11, 5
    %p179 = pnand %p177, %p178
    %p180 = pneg %p179
    // Predicated region
    $region9: #{nano_llama_forward.1} parent=5 // pred_check
      _
    $region10: #{nano_llama_forward.1} parent=5 // pred_check_branch
      %182 = sbr.rel (%p179) target = $region12
    $region11: #{nano_llama_forward.1} parent=5 // pred_region
      %s183 = ssub.s32 %s11, 1
      // Predicated region
      $region13: #{nano_llama_forward.1} parent=11 // pred_check
        %p184 = pneg %p70
      $region14: #{nano_llama_forward.1} parent=11 // pred_check_branch
        %186 = sbr.rel (%p184) target = $region16
      $region15: #{nano_llama_forward.1} parent=11 // pred_region
        _
      $region16: #{nano_llama_forward.1} parent=11 // pred_fallthru
        _
      // Predicated region
      $region17: #{nano_llama_forward.1} parent=11 // pred_check
        %p187 = pneg %p117
      $region18: #{nano_llama_forward.1} parent=11 // pred_check_branch
        %189 = sbr.rel (%p187) target = $region20
      $region19: #{nano_llama_forward.1} parent=11 // pred_region
        _
      $region20: #{nano_llama_forward.1} parent=11 // pred_fallthru
        _
    $region12: #{nano_llama_forward.1} parent=5 // pred_fallthru
      _
    %p190 = scmp.lt.s32.totalorder %s11, 4
    // Predicated region
    $region21: #{nano_llama_forward.1} parent=5 // pred_check
      %p191 = pneg %p190
    $region22: #{nano_llama_forward.1} parent=5 // pred_check_branch
      %193 = sbr.rel (%p191) target = $region24
    $region23: #{nano_llama_forward.1} parent=5 // pred_region
      // Predicated region
      $region25: #{nano_llama_forward.1} parent=23 // pred_check
        %p194 = pneg %p43
      $region26: #{nano_llama_forward.1} parent=23 // pred_check_branch
        %196 = sbr.rel (%p194) target = $region28
      $region27: #{nano_llama_forward.1} parent=23 // pred_region
        %p197 = scmp.lt.s32.totalorder %s18, 1
        %s198 = scalar_select %p197, %s18, 1
        %s199 = smul.addr %s198, 8
        %s200 = scalar_lea.vmem %s0, %s199
      $region28: #{nano_llama_forward.1} parent=23 // pred_fallthru
        _
      // Predicated region
      $region29: #{nano_llama_forward.1} parent=23 // pred_check
        %p201 = pneg %p90
      $region30: #{nano_llama_forward.1} parent=23 // pred_check_branch
        %203 = sbr.rel (%p201) target = $region32
      $region31: #{nano_llama_forward.1} parent=23 // pred_region
        %p204 = scmp.lt.s32.totalorder %s18, 1
        %s205 = scalar_select %p204, %s18, 1
        %s206 = smul.addr %s205, 8
        %s207 = scalar_lea.vmem %s2, %s206
      $region32: #{nano_llama_forward.1} parent=23 // pred_fallthru
        _
      // Predicated region
      $region33: #{nano_llama_forward.1} parent=23 // pred_check
        %p208 = pneg %p137
      $region34: #{nano_llama_forward.1} parent=23 // pred_check_branch
        %210 = sbr.rel (%p208) target = $region36
      $region35: #{nano_llama_forward.1} parent=23 // pred_region
        %p211 = scmp.lt.s32.totalorder %s19, 1
        %s212 = scalar_select %p211, %s19, 1
        %s213 = smul.addr %s212, 16
        %s214 = smul.addr %s213, 8
        %s215 = scalar_lea.vmem %s4, %s214
      $region36: #{nano_llama_forward.1} parent=23 // pred_fallthru
        _
    $region24: #{nano_llama_forward.1} parent=5 // pred_fallthru
      _
    %p216 = scmp.le.s32.totalorder 1, %s11
    %p217 = scmp.lt.s32.totalorder %s11, 5
    %p218 = pnand %p216, %p217
    %p219 = pneg %p218
    // Predicated region
    $region37: #{nano_llama_forward.1} parent=5 // pred_check
      _
    $region38: #{nano_llama_forward.1} parent=5 // pred_check_branch
      %221 = sbr.rel (%p218) target = $region40
    $region39: #{nano_llama_forward.1} parent=5 // pred_region
      %s222 = ssub.s32 %s11, 1
      %p223 = scmp.lt.s32.totalorder %s20, 1
      %s224 = scalar_select %p223, %s20, 1
      %s225 = smul.addr %s224, 8
      %s226 = scalar_lea.vmem %s0, %s225
      %p227 = pneg %p49
      %p228 = pneg %p46
      %p229 = pneg %p70
      %p230 = pneg %p67
      %p231 = scmp.lt.s32.totalorder %s20, 1
      %s232 = scalar_select %p231, %s20, 1
      %s233 = smul.addr %s232, 8
      %s234 = scalar_lea.vmem %s2, %s233
      %p235 = pneg %p96
      %p236 = pneg %p93
      %p237 = pneg %p117
      %p238 = pneg %p114
      %p239 = scmp.lt.s32.totalorder %s21, 1
      %s240 = scalar_select %p239, %s21, 1
      %s241 = smul.addr %s240, 16
      %s242 = smul.addr %s241, 8
      %s243 = scalar_lea.vmem %s4, %s242
      %p244 = pneg %p143
      %p245 = pneg %p140
      %p246 = pneg %p169
      %p247 = pneg %p166
      %p248 = scmp.lt.s32.totalorder %s20, 1
      %s249 = scalar_select %p248, %s20, 1
      %s250 = smul.addr %s249, 8
      %s251 = scalar_lea.vmem %s5, %s250
      %p252 = scmp.lt.s32.totalorder %s20, 1
      %s253 = scalar_select %p252, %s20, 1
      %s254 = smul.addr %s253, 8
      %s255 = scalar_lea.vmem %s0, %s254
      %p256 = scmp.lt.s32.totalorder %s20, 1
      %s257 = scalar_select %p256, %s20, 1
      %s258 = smul.addr %s257, 8
      %s259 = scalar_lea.vmem %s2, %s258
      %p260 = scmp.lt.s32.totalorder %s21, 1
      %s261 = scalar_select %p260, %s21, 1
      %s262 = smul.addr %s261, 16
      %s263 = smul.addr %s262, 8
      %s264 = scalar_lea.vmem %s4, %s263
      %p265 = scmp.lt.s32.totalorder %s20, 1
      %s266 = scalar_select %p265, %s20, 1
      %s267 = smul.addr %s266, 8
      %s268 = scalar_lea.vmem %s5, %s267
      %p269 = scmp.eq.s32.totalorder %s21, 0
      // Predicated region
      $region41: #{nano_llama_forward.1} parent=39 // pred_check
        %p270 = pneg %p269
      $region42: #{nano_llama_forward.1} parent=39 // pred_check_branch
        %272 = sbr.rel (%p270) target = $region44
      $region43: #{nano_llama_forward.1} parent=39 // pred_region
        %v273 = vld [vmem:[%s255] sm:$0xff]
        %vm274 = vcmask 261120
        %275 = vst.msk [vmem:[%s268] sm:$0xff] %vm274, %v273
      $region44: #{nano_llama_forward.1} parent=39 // pred_fallthru
        _
      %v276 = vld [vmem:[%s268] sm:$0xff]
      %v277 = vld [vmem:[%s264] sm:$0xff]
      %v278 = vld [vmem:[%s264 + $0x8] sm:$0xff]
      %v279 = vld [vmem:[%s264 + $0x10] sm:$0xff]
      %v280 = vld [vmem:[%s264 + $0x18] sm:$0xff]
      %v281 = vld [vmem:[%s264 + $0x20] sm:$0xff]
      %v282 = vld [vmem:[%s264 + $0x28] sm:$0xff]
      %v283 = vld [vmem:[%s264 + $0x30] sm:$0xff]
      %v284 = vld [vmem:[%s264 + $0x38] sm:$0xff]
      %v285 = vld [vmem:[%s264 + $0x40] sm:$0xff]
      %v286 = vld [vmem:[%s264 + $0x48] sm:$0xff]
      %v287 = vld [vmem:[%s264 + $0x50] sm:$0xff]
      %v288 = vld [vmem:[%s264 + $0x58] sm:$0xff]
      %v289 = vld [vmem:[%s264 + $0x60] sm:$0xff]
      %v290 = vld [vmem:[%s264 + $0x68] sm:$0xff]
      %v291 = vld [vmem:[%s264 + $0x70] sm:$0xff]
      %v292 = vld [vmem:[%s264 + $0x78] sm:$0xff]
      %v293 = vld [vmem:[%s264 + $0x40] sm:$0x1]
      %v294 = vld [vmem:[%s264 + $0x41] sm:$0x1]
      %v295 = vmul.f32 %v276, %v276
      %vm296 = vcmask 261120
      %v297 = vsel %vm296, %v295, 0.0
      %298 = vadd.xlane.f32.xlu0 %v297
      %v299 = vpop.xlane.xlu0 %298
      %v300 = vrcp.pop 32.0
      %v301 = vmul.f32 %v299, %v300
      %v302 = vadd.f32 %v301, 1e-06
      %v303 = vrsqrt.pop %v302
      %v304 = vmul.f32 %v276, %v303
      %v305 = vlaneseq
      %v306 = vshrl.u32 %v305, 7
      %v307 = vsub.s32 0, %v306
      %v308 = vrot.slane %v293, %v307
      %310 = vrot.lane.b32.xlu0 %v308, 96
      %v311 = vpop.permute.xlu0 %310
      %v313 = vmul.f32 %v304, %v311
      %v315 = vsel %vm296, %v313, 0
      %317 = vmatprep.subr.mxu0 0.0
      %318 = vmatpush1.msra.mxu0 %v277
      %319 = vmatprep.subr.mxu0 0.0
      %320 = vmatpush1.msra.mxu0 %v278
      %321 = vmatprep.subr.mxu0 0.0
      %322 = vmatpush1.msra.mxu0 %v279
      %323 = vmatprep.subr.mxu0 0.0
      %324 = vmatpush1.msra.mxu0 %v280
      %325 = vmatprep.subr.mxu0 0.0
      %326 = vmatpush1.msra.mxu0 0.0
      %327 = vmatprep.subr.mxu0 0.0
      %328 = vmatpush1.msra.mxu0 0.0
      %329 = vmatprep.subr.mxu0 0.0
      %330 = vmatpush1.msra.mxu0 0.0
      %331 = vmatprep.subr.mxu0 0.0
      %332 = vmatpush1.msra.mxu0 0.0
      %333 = vmatprep.subr.mxu0 0.0
      %334 = vmatpush1.msra.mxu0 0.0
      %335 = vmatprep.subr.mxu0 0.0
      %336 = vmatpush1.msra.mxu0 0.0
      %337 = vmatprep.subr.mxu0 0.0
      %338 = vmatpush1.msra.mxu0 0.0
      %339 = vmatprep.subr.mxu0 0.0
      %340 = vmatpush1.msra.mxu0 0.0
      %341 = vmatprep.subr.mxu0 0.0
      %342 = vmatpush1.msra.mxu0 0.0
      %343 = vmatprep.subr.mxu0 0.0
      %344 = vmatpush1.msra.mxu0 0.0
      %345 = vmatprep.subr.mxu0 0.0
      %346 = vmatpush1.msra.mxu0 0.0
      %347 = vmatprep.subr.mxu0 0.0
      %348 = vmatpush1.msra.mxu0 0.0
      %349 = vmatprep.subr.mxu0 0.0
      %350 = vmatpush1.msra.mxu0 0.0
      %351 = vmatprep.subr.mxu0 0.0
      %352 = vmatpush1.msra.mxu0 0.0
      %353 = vmatprep.subr.mxu0 0.0
      %354 = vmatpush1.msra.mxu0 0.0
      %355 = vmatprep.subr.mxu0 0.0
      %356 = vmatpush1.msra.mxu0 0.0
      %357 = vmatprep.subr.mxu0 0.0
      %358 = vmatpush1.msra.mxu0 0.0
      %359 = vmatprep.subr.mxu0 0.0
      %360 = vmatpush1.msra.mxu0 0.0
      %361 = vmatprep.subr.mxu0 0.0
      %362 = vmatpush1.msra.mxu0 0.0
      %363 = vmatprep.subr.mxu0 0.0
      %364 = vmatpush1.msra.mxu0 0.0
      %365 = vmatprep.subr.mxu0 0.0
      %366 = vmatpush1.msra.mxu0 0.0
      %367 = vmatprep.subr.mxu0 0.0
      %368 = vmatpush1.msra.mxu0 0.0
      %369 = vmatprep.subr.mxu0 0.0
      %370 = vmatpush1.msra.mxu0 0.0
      %371 = vmatprep.subr.mxu0 0.0
      %372 = vmatpush1.msra.mxu0 0.0
      %373 = vmatprep.subr.mxu0 0.0
      %374 = vmatpush1.msra.mxu0 0.0
      %375 = vmatprep.subr.mxu0 0.0
      %376 = vmatpush1.msra.mxu0 0.0
      %377 = vmatprep.subr.mxu0 0.0
      %378 = vmatpush1.msra.mxu0 0.0
      %379 = vmatprep.subr.mxu0 0.0
      %380 = vmatpush1.msra.mxu0 0.0
      %381 = vmatprep.mubr.f32.mxu0 0.0
      %382 = vmatmul.mubr.f32.gmra.mrb[0].mxu0 %v315
      %v383 = vpop.f32.mrb[0].mxu0
      %v384 = vadd.f32 0.0, %v383
      %v385 = vpop.f32.mrb[0].mxu0
      %386 = vdwg.mxu0
      %v387 = vsub.f32 0.0, %v384
      %389 = vrot.lane.b32.xlu0 %v387, 112
      %v390 = vpop.permute.xlu0 %389
      %393 = vrot.lane.b32.xlu0 %v384, 16
      %v394 = vpop.permute.xlu0 %393
      %vm396 = vcmask 130048
      %v397 = vsel %vm396, %v390, %v394
      %v398 = vsel %vm296, %v397, %v390
      %vm399 = vcmask 392192
      %v400 = vsel %vm399, %v398, %v394
      %v401 = vld [vmem:[%s1] sm:$0xff]
      %v402 = vmul.f32 %v384, %v401
      %404 = vrot.lane.b32.xlu0 %v401, 64
      %v405 = vpop.permute.xlu0 %404
      %v407 = vmul.f32 %v400, %v405
      %v408 = vadd.f32 %v402, %v407
      %v409 = vld [vmem:[%s3] sm:$0xff]
      %v410 = vld [vmem:[%s3 + $0x8] sm:$0xff]
      %v411 = vld [vmem:[%s3 + $0x10] sm:$0xff]
      %v412 = vld [vmem:[%s3 + $0x18] sm:$0xff]
      %417 = vrot.lane.b32.xlu0 %v409, 32
      %v418 = vpop.permute.xlu0 %417
      %419 = vrot.lane.b32.xlu0 %v410, 32
      %v420 = vpop.permute.xlu0 %419
      %421 = vrot.lane.b32.xlu0 %v411, 32
      %v422 = vpop.permute.xlu0 %421
      %423 = vrot.lane.b32.xlu0 %v412, 32
      %v424 = vpop.permute.xlu0 %423
      %v429 = vmul.f32 %v408, %v418
      %v430 = vmul.f32 %v408, %v420
      %v431 = vmul.f32 %v408, %v422
      %v432 = vmul.f32 %v408, %v424
      %v433 = vmul.f32 %v384, %v418
      %v434 = vmul.f32 %v384, %v420
      %v435 = vmul.f32 %v384, %v422
      %v436 = vmul.f32 %v384, %v424
      %v437 = vld [vmem:[%s259] sm:$0xff]
      %442 = vrot.lane.b32.xlu0 %v429, 96
      %v443 = vpop.permute.xlu0 %442
      %444 = vrot.lane.b32.xlu0 %v430, 96
      %v445 = vpop.permute.xlu0 %444
      %446 = vrot.lane.b32.xlu0 %v431, 96
      %v447 = vpop.permute.xlu0 %446
      %448 = vrot.lane.b32.xlu0 %v432, 96
      %v449 = vpop.permute.xlu0 %448
      %v451 = vsel %vm296, %v408, 0
      %v453 = vsel %vm296, %v443, 0
      %v455 = vsel %vm296, %v445, 0
      %v457 = vsel %vm296, %v447, 0
      %v459 = vsel %vm296, %v449, 0
      %461 = vmatprep.subr.mxu0 0.0
      %462 = vmatpush1.xpose.msra.mxu0 %v453
      %463 = vmatprep.subr.mxu0 0.0
      %464 = vmatpush1.xpose.msra.mxu0 %v455
      %465 = vmatprep.subr.mxu0 0.0
      %466 = vmatpush1.xpose.msra.mxu0 %v457
      %467 = vmatprep.subr.mxu0 0.0
      %468 = vmatpush1.xpose.msra.mxu0 %v459
      %469 = vmatprep.subr.mxu0 0.0
      %470 = vmatpush1.xpose.msra.mxu0 0.0
      %471 = vmatprep.subr.mxu0 0.0
      %472 = vmatpush1.xpose.msra.mxu0 0.0
      %473 = vmatprep.subr.mxu0 0.0
      %474 = vmatpush1.xpose.msra.mxu0 0.0
      %475 = vmatprep.subr.mxu0 0.0
      %476 = vmatpush1.xpose.msra.mxu0 0.0
      %477 = vmatprep.subr.mxu0 0.0
      %478 = vmatpush1.xpose.msra.mxu0 0.0
      %479 = vmatprep.subr.mxu0 0.0
      %480 = vmatpush1.xpose.msra.mxu0 0.0
      %481 = vmatprep.subr.mxu0 0.0
      %482 = vmatpush1.xpose.msra.mxu0 0.0
      %483 = vmatprep.subr.mxu0 0.0
      %484 = vmatpush1.xpose.msra.mxu0 0.0
      %485 = vmatprep.subr.mxu0 0.0
      %486 = vmatpush1.xpose.msra.mxu0 0.0
      %487 = vmatprep.subr.mxu0 0.0
      %488 = vmatpush1.xpose.msra.mxu0 0.0
      %489 = vmatprep.subr.mxu0 0.0
      %490 = vmatpush1.xpose.msra.mxu0 0.0
      %491 = vmatprep.subr.mxu0 0.0
      %492 = vmatpush1.xpose.msra.mxu0 0.0
      %493 = vmatprep.subr.mxu0 0.0
      %494 = vmatpush1.xpose.msra.mxu0 0.0
      %495 = vmatprep.subr.mxu0 0.0
      %496 = vmatpush1.xpose.msra.mxu0 0.0
      %497 = vmatprep.subr.mxu0 0.0
      %498 = vmatpush1.xpose.msra.mxu0 0.0
      %499 = vmatprep.subr.mxu0 0.0
      %500 = vmatpush1.xpose.msra.mxu0 0.0
      %501 = vmatprep.subr.mxu0 0.0
      %502 = vmatpush1.xpose.msra.mxu0 0.0
      %503 = vmatprep.subr.mxu0 0.0
      %504 = vmatpush1.xpose.msra.mxu0 0.0
      %505 = vmatprep.subr.mxu0 0.0
      %506 = vmatpush1.xpose.msra.mxu0 0.0
      %507 = vmatprep.subr.mxu0 0.0
      %508 = vmatpush1.xpose.msra.mxu0 0.0
      %509 = vmatprep.subr.mxu0 0.0
      %510 = vmatpush1.xpose.msra.mxu0 0.0
      %511 = vmatprep.subr.mxu0 0.0
      %512 = vmatpush1.xpose.msra.mxu0 0.0
      %513 = vmatprep.subr.mxu0 0.0
      %514 = vmatpush1.xpose.msra.mxu0 0.0
      %515 = vmatprep.subr.mxu0 0.0
      %516 = vmatpush1.xpose.msra.mxu0 0.0
      %517 = vmatprep.subr.mxu0 0.0
      %518 = vmatpush1.xpose.msra.mxu0 0.0
      %519 = vmatprep.subr.mxu0 0.0
      %520 = vmatpush1.xpose.msra.mxu0 0.0
      %521 = vmatprep.subr.mxu0 0.0
      %522 = vmatpush1.xpose.msra.mxu0 0.0
      %523 = vmatprep.subr.mxu0 0.0
      %524 = vmatpush1.xpose.msra.mxu0 0.0
      %525 = vmatprep.mubr.f32.mxu0 0.0
      %526 = vmatmul.mubr.f32.gmra.mrb[0].mxu0 %v451
      %v527 = vpop.f32.mrb[0].mxu0
      %v528 = vadd.f32 %v437, %v527
      %v529 = vpop.f32.mrb[0].mxu0
      %530 = vdwg.mxu0
      %v531 = vsel %vm296, %v528, -inf
      %532 = vmax.xlane.f32.xlu0 %v531
      %v533 = vpop.xlane.xlu0 %532
      %v534 = vsub.f32 %v528, %v533
      %v535 = vmul.f32 %v534, 1.442695
      %v536 = vpow.pop %v535
      %537 = vrot.lane.b32.xlu0 %v409, 96
      %v538 = vpop.permute.xlu0 %537
      %539 = vrot.lane.b32.xlu0 %v410, 96
      %v540 = vpop.permute.xlu0 %539
      %541 = vrot.lane.b32.xlu0 %v411, 96
      %v542 = vpop.permute.xlu0 %541
      %543 = vrot.lane.b32.xlu0 %v412, 96
      %v544 = vpop.permute.xlu0 %543
      %v550 = vsel %vm296, %v536, 0
      %552 = vmatprep.subr.mxu0 0.0
      %553 = vmatpush1.msra.mxu0 %v538
      %554 = vmatprep.subr.mxu0 0.0
      %555 = vmatpush1.msra.mxu0 %v540
      %556 = vmatprep.subr.mxu0 0.0
      %557 = vmatpush1.msra.mxu0 %v542
      %558 = vmatprep.subr.mxu0 0.0
      %559 = vmatpush1.msra.mxu0 %v544
      %560 = vmatprep.subr.mxu0 0.0
      %561 = vmatpush1.msra.mxu0 0.0
      %562 = vmatprep.subr.mxu0 0.0
      %563 = vmatpush1.msra.mxu0 0.0
      %564 = vmatprep.subr.mxu0 0.0
      %565 = vmatpush1.msra.mxu0 0.0
      %566 = vmatprep.subr.mxu0 0.0
      %567 = vmatpush1.msra.mxu0 0.0
      %568 = vmatprep.subr.mxu0 0.0
      %569 = vmatpush1.msra.mxu0 0.0
      %570 = vmatprep.subr.mxu0 0.0
      %571 = vmatpush1.msra.mxu0 0.0
      %572 = vmatprep.subr.mxu0 0.0
      %573 = vmatpush1.msra.mxu0 0.0
      %574 = vmatprep.subr.mxu0 0.0
      %575 = vmatpush1.msra.mxu0 0.0
      %576 = vmatprep.subr.mxu0 0.0
      %577 = vmatpush1.msra.mxu0 0.0
      %578 = vmatprep.subr.mxu0 0.0
      %579 = vmatpush1.msra.mxu0 0.0
      %580 = vmatprep.subr.mxu0 0.0
      %581 = vmatpush1.msra.mxu0 0.0
      %582 = vmatprep.subr.mxu0 0.0
      %583 = vmatpush1.msra.mxu0 0.0
      %584 = vmatprep.subr.mxu0 0.0
      %585 = vmatpush1.msra.mxu0 0.0
      %586 = vmatprep.subr.mxu0 0.0
      %587 = vmatpush1.msra.mxu0 0.0
      %588 = vmatprep.subr.mxu0 0.0
      %589 = vmatpush1.msra.mxu0 0.0
      %590 = vmatprep.subr.mxu0 0.0
      %591 = vmatpush1.msra.mxu0 0.0
      %592 = vmatprep.subr.mxu0 0.0
      %593 = vmatpush1.msra.mxu0 0.0
      %594 = vmatprep.subr.mxu0 0.0
      %595 = vmatpush1.msra.mxu0 0.0
      %596 = vmatprep.subr.mxu0 0.0
      %597 = vmatpush1.msra.mxu0 0.0
      %598 = vmatprep.subr.mxu0 0.0
      %599 = vmatpush1.msra.mxu0 0.0
      %600 = vmatprep.subr.mxu0 0.0
      %601 = vmatpush1.msra.mxu0 0.0
      %602 = vmatprep.subr.mxu0 0.0
      %603 = vmatpush1.msra.mxu0 0.0
      %604 = vmatprep.subr.mxu0 0.0
      %605 = vmatpush1.msra.mxu0 0.0
      %606 = vmatprep.subr.mxu0 0.0
      %607 = vmatpush1.msra.mxu0 0.0
      %608 = vmatprep.subr.mxu0 0.0
      %609 = vmatpush1.msra.mxu0 0.0
      %610 = vmatprep.subr.mxu0 0.0
      %611 = vmatpush1.msra.mxu0 0.0
      %612 = vmatprep.subr.mxu0 0.0
      %613 = vmatpush1.msra.mxu0 0.0
      %614 = vmatprep.subr.mxu0 0.0
      %615 = vmatpush1.msra.mxu0 0.0
      %616 = vmatprep.mubr.f32.mxu0 0.0
      %617 = vmatmul.mubr.f32.gmra.mrb[0].mxu0 %v550
      %v618 = vpop.f32.mrb[0].mxu0
      %v619 = vadd.f32 0.0, %v618
      %v620 = vpop.f32.mrb[0].mxu0
      %621 = vdwg.mxu0
      %626 = vrot.lane.b32.xlu0 %v433, 64
      %v627 = vpop.permute.xlu0 %626
      %628 = vrot.lane.b32.xlu0 %v434, 64
      %v629 = vpop.permute.xlu0 %628
      %630 = vrot.lane.b32.xlu0 %v435, 64
      %v631 = vpop.permute.xlu0 %630
      %632 = vrot.lane.b32.xlu0 %v436, 64
      %v633 = vpop.permute.xlu0 %632
      %638 = vmatprep.subr.mxu0 0.0
      %639 = vmatpush1.msra.mxu0 %v627
      %640 = vmatprep.subr.mxu0 0.0
      %641 = vmatpush1.msra.mxu0 %v629
      %642 = vmatprep.subr.mxu0 0.0
      %643 = vmatpush1.msra.mxu0 %v631
      %644 = vmatprep.subr.mxu0 0.0
      %645 = vmatpush1.msra.mxu0 %v633
      %646 = vmatprep.subr.mxu0 0.0
      %647 = vmatpush1.msra.mxu0 0.0
      %648 = vmatprep.subr.mxu0 0.0
      %649 = vmatpush1.msra.mxu0 0.0
      %650 = vmatprep.subr.mxu0 0.0
      %651 = vmatpush1.msra.mxu0 0.0
      %652 = vmatprep.subr.mxu0 0.0
      %653 = vmatpush1.msra.mxu0 0.0
      %654 = vmatprep.subr.mxu0 0.0
      %655 = vmatpush1.msra.mxu0 0.0
      %656 = vmatprep.subr.mxu0 0.0
      %657 = vmatpush1.msra.mxu0 0.0
      %658 = vmatprep.subr.mxu0 0.0
      %659 = vmatpush1.msra.mxu0 0.0
      %660 = vmatprep.subr.mxu0 0.0
      %661 = vmatpush1.msra.mxu0 0.0
      %662 = vmatprep.subr.mxu0 0.0
      %663 = vmatpush1.msra.mxu0 0.0
      %664 = vmatprep.subr.mxu0 0.0
      %665 = vmatpush1.msra.mxu0 0.0
      %666 = vmatprep.subr.mxu0 0.0
      %667 = vmatpush1.msra.mxu0 0.0
      %668 = vmatprep.subr.mxu0 0.0
      %669 = vmatpush1.msra.mxu0 0.0
      %670 = vmatprep.subr.mxu0 0.0
      %671 = vmatpush1.msra.mxu0 0.0
      %672 = vmatprep.subr.mxu0 0.0
      %673 = vmatpush1.msra.mxu0 0.0
      %674 = vmatprep.subr.mxu0 0.0
      %675 = vmatpush1.msra.mxu0 0.0
      %676 = vmatprep.subr.mxu0 0.0
      %677 = vmatpush1.msra.mxu0 0.0
      %678 = vmatprep.subr.mxu0 0.0
      %679 = vmatpush1.msra.mxu0 0.0
      %680 = vmatprep.subr.mxu0 0.0
      %681 = vmatpush1.msra.mxu0 0.0
      %682 = vmatprep.subr.mxu0 0.0
      %683 = vmatpush1.msra.mxu0 0.0
      %684 = vmatprep.subr.mxu0 0.0
      %685 = vmatpush1.msra.mxu0 0.0
      %686 = vmatprep.subr.mxu0 0.0
      %687 = vmatpush1.msra.mxu0 0.0
      %688 = vmatprep.subr.mxu0 0.0
      %689 = vmatpush1.msra.mxu0 0.0
      %690 = vmatprep.subr.mxu0 0.0
      %691 = vmatpush1.msra.mxu0 0.0
      %692 = vmatprep.subr.mxu0 0.0
      %693 = vmatpush1.msra.mxu0 0.0
      %694 = vmatprep.subr.mxu0 0.0
      %695 = vmatpush1.msra.mxu0 0.0
      %696 = vmatprep.subr.mxu0 0.0
      %697 = vmatpush1.msra.mxu0 0.0
      %698 = vmatprep.subr.mxu0 0.0
      %699 = vmatpush1.msra.mxu0 0.0
      %700 = vmatprep.subr.mxu0 0.0
      %701 = vmatpush1.msra.mxu0 0.0
      %702 = vmatprep.mubr.f32.mxu0 0.0
      %703 = vmatmul.mubr.f32.gmra.mrb[0].mxu0 %v550
      %v704 = vpop.f32.mrb[0].mxu0
      %v705 = vadd.f32 0.0, %v704
      %v706 = vpop.f32.mrb[0].mxu0
      %707 = vdwg.mxu0
      %v708 = vrcp.pop %v619
      %v709 = vmul.f32 %v705, %v708
      %714 = vrot.lane.b32.xlu0 %v277, 32
      %v715 = vpop.permute.xlu0 %714
      %716 = vrot.lane.b32.xlu0 %v278, 32
      %v717 = vpop.permute.xlu0 %716
      %718 = vrot.lane.b32.xlu0 %v279, 32
      %v719 = vpop.permute.xlu0 %718
      %720 = vrot.lane.b32.xlu0 %v280, 32
      %v721 = vpop.permute.xlu0 %720
      %v727 = vsel %vm296, %v709, 0
      %729 = vmatprep.subr.mxu0 0.0
      %730 = vmatpush1.msra.mxu0 %v715
      %731 = vmatprep.subr.mxu0 0.0
      %732 = vmatpush1.msra.mxu0 %v717
      %733 = vmatprep.subr.mxu0 0.0
      %734 = vmatpush1.msra.mxu0 %v719
      %735 = vmatprep.subr.mxu0 0.0
      %736 = vmatpush1.msra.mxu0 %v721
      %737 = vmatprep.subr.mxu0 0.0
      %738 = vmatpush1.msra.mxu0 0.0
      %739 = vmatprep.subr.mxu0 0.0
      %740 = vmatpush1.msra.mxu0 0.0
      %741 = vmatprep.subr.mxu0 0.0
      %742 = vmatpush1.msra.mxu0 0.0
      %743 = vmatprep.subr.mxu0 0.0
      %744 = vmatpush1.msra.mxu0 0.0
      %745 = vmatprep.subr.mxu0 0.0
      %746 = vmatpush1.msra.mxu0 0.0
      %747 = vmatprep.subr.mxu0 0.0
      %748 = vmatpush1.msra.mxu0 0.0
      %749 = vmatprep.subr.mxu0 0.0
      %750 = vmatpush1.msra.mxu0 0.0
      %751 = vmatprep.subr.mxu0 0.0
      %752 = vmatpush1.msra.mxu0 0.0
      %753 = vmatprep.subr.mxu0 0.0
      %754 = vmatpush1.msra.mxu0 0.0
      %755 = vmatprep.subr.mxu0 0.0
      %756 = vmatpush1.msra.mxu0 0.0
      %757 = vmatprep.subr.mxu0 0.0
      %758 = vmatpush1.msra.mxu0 0.0
      %759 = vmatprep.subr.mxu0 0.0
      %760 = vmatpush1.msra.mxu0 0.0
      %761 = vmatprep.subr.mxu0 0.0
      %762 = vmatpush1.msra.mxu0 0.0
      %763 = vmatprep.subr.mxu0 0.0
      %764 = vmatpush1.msra.mxu0 0.0
      %765 = vmatprep.subr.mxu0 0.0
      %766 = vmatpush1.msra.mxu0 0.0
      %767 = vmatprep.subr.mxu0 0.0
      %768 = vmatpush1.msra.mxu0 0.0
      %769 = vmatprep.subr.mxu0 0.0
      %770 = vmatpush1.msra.mxu0 0.0
      %771 = vmatprep.subr.mxu0 0.0
      %772 = vmatpush1.msra.mxu0 0.0
      %773 = vmatprep.subr.mxu0 0.0
      %774 = vmatpush1.msra.mxu0 0.0
      %775 = vmatprep.subr.mxu0 0.0
      %776 = vmatpush1.msra.mxu0 0.0
      %777 = vmatprep.subr.mxu0 0.0
      %778 = vmatpush1.msra.mxu0 0.0
      %779 = vmatprep.subr.mxu0 0.0
      %780 = vmatpush1.msra.mxu0 0.0
      %781 = vmatprep.subr.mxu0 0.0
      %782 = vmatpush1.msra.mxu0 0.0
      %783 = vmatprep.subr.mxu0 0.0
      %784 = vmatpush1.msra.mxu0 0.0
      %785 = vmatprep.subr.mxu0 0.0
      %786 = vmatpush1.msra.mxu0 0.0
      %787 = vmatprep.subr.mxu0 0.0
      %788 = vmatpush1.msra.mxu0 0.0
      %789 = vmatprep.subr.mxu0 0.0
      %790 = vmatpush1.msra.mxu0 0.0
      %791 = vmatprep.subr.mxu0 0.0
      %792 = vmatpush1.msra.mxu0 0.0
      %793 = vmatprep.mubr.f32.mxu0 0.0
      %794 = vmatmul.mubr.f32.gmra.mrb[0].mxu0 %v727
      %v795 = vpop.f32.mrb[0].mxu0
      %v796 = vadd.f32 0.0, %v795
      %v797 = vpop.f32.mrb[0].mxu0
      %798 = vdwg.mxu0
      %v799 = vadd.f32 %v276, %v796
      %v800 = vmul.f32 %v799, %v799
      %v801 = vsel %vm296, %v800, 0.0
      %802 = vadd.xlane.f32.xlu0 %v801
      %v803 = vpop.xlane.xlu0 %802
      %v804 = vmul.f32 %v803, %v300
      %v805 = vadd.f32 %v804, 1e-06
      %v806 = vrsqrt.pop %v805
      %v807 = vmul.f32 %v799, %v806
      %v808 = vlaneseq
      %v809 = vshrl.u32 %v808, 7
      %v810 = vsub.s32 0, %v809
      %v811 = vrot.slane %v294, %v810
      %813 = vrot.lane.b32.xlu0 %v811, 96
      %v814 = vpop.permute.xlu0 %813
      %v816 = vmul.f32 %v807, %v814
      %v818 = vsel %vm296, %v816, 0
      %820 = vmatprep.subr.mxu0 0.0
      %821 = vmatpush1.msra.mxu0 %v281
      %822 = vmatprep.subr.mxu0 0.0
      %823 = vmatpush1.msra.mxu0 %v282
      %824 = vmatprep.subr.mxu0 0.0
      %825 = vmatpush1.msra.mxu0 %v283
      %826 = vmatprep.subr.mxu0 0.0
      %827 = vmatpush1.msra.mxu0 %v284
      %828 = vmatprep.subr.mxu0 0.0
      %829 = vmatpush1.msra.mxu0 0.0
      %830 = vmatprep.subr.mxu0 0.0
      %831 = vmatpush1.msra.mxu0 0.0
      %832 = vmatprep.subr.mxu0 0.0
      %833 = vmatpush1.msra.mxu0 0.0
      %834 = vmatprep.subr.mxu0 0.0
      %835 = vmatpush1.msra.mxu0 0.0
      %836 = vmatprep.subr.mxu0 0.0
      %837 = vmatpush1.msra.mxu0 0.0
      %838 = vmatprep.subr.mxu0 0.0
      %839 = vmatpush1.msra.mxu0 0.0
      %840 = vmatprep.subr.mxu0 0.0
      %841 = vmatpush1.msra.mxu0 0.0
      %842 = vmatprep.subr.mxu0 0.0
      %843 = vmatpush1.msra.mxu0 0.0
      %844 = vmatprep.subr.mxu0 0.0
      %845 = vmatpush1.msra.mxu0 0.0
      %846 = vmatprep.subr.mxu0 0.0
      %847 = vmatpush1.msra.mxu0 0.0
      %848 = vmatprep.subr.mxu0 0.0
      %849 = vmatpush1.msra.mxu0 0.0
      %850 = vmatprep.subr.mxu0 0.0
      %851 = vmatpush1.msra.mxu0 0.0
      %852 = vmatprep.subr.mxu0 0.0
      %853 = vmatpush1.msra.mxu0 0.0
      %854 = vmatprep.subr.mxu0 0.0
      %855 = vmatpush1.msra.mxu0 0.0
      %856 = vmatprep.subr.mxu0 0.0
      %857 = vmatpush1.msra.mxu0 0.0
      %858 = vmatprep.subr.mxu0 0.0
      %859 = vmatpush1.msra.mxu0 0.0
      %860 = vmatprep.subr.mxu0 0.0
      %861 = vmatpush1.msra.mxu0 0.0
      %862 = vmatprep.subr.mxu0 0.0
      %863 = vmatpush1.msra.mxu0 0.0
      %864 = vmatprep.subr.mxu0 0.0
      %865 = vmatpush1.msra.mxu0 0.0
      %866 = vmatprep.subr.mxu0 0.0
      %867 = vmatpush1.msra.mxu0 0.0
      %868 = vmatprep.subr.mxu0 0.0
      %869 = vmatpush1.msra.mxu0 0.0
      %870 = vmatprep.subr.mxu0 0.0
      %871 = vmatpush1.msra.mxu0 0.0
      %872 = vmatprep.subr.mxu0 0.0
      %873 = vmatpush1.msra.mxu0 0.0
      %874 = vmatprep.subr.mxu0 0.0
      %875 = vmatpush1.msra.mxu0 0.0
      %876 = vmatprep.subr.mxu0 0.0
      %877 = vmatpush1.msra.mxu0 0.0
      %878 = vmatprep.subr.mxu0 0.0
      %879 = vmatpush1.msra.mxu0 0.0
      %880 = vmatprep.subr.mxu0 0.0
      %881 = vmatpush1.msra.mxu0 0.0
      %882 = vmatprep.subr.mxu0 0.0
      %883 = vmatpush1.msra.mxu0 0.0
      %884 = vmatprep.mubr.f32.mxu0 0.0
      %885 = vmatmul.mubr.f32.gmra.mrb[0].mxu0 %v818
      %v886 = vpop.f32.mrb[0].mxu0
      %v887 = vadd.f32 0.0, %v886
      %v888 = vpop.f32.mrb[0].mxu0
      %889 = vdwg.mxu0
      %v890 = vxor.u32 %v887, 2147483648
      %v891 = vmul.f32 %v890, 1.442695
      %v892 = vpow.pop %v891
      %v893 = vadd.f32 %v892, 1.0
      %v894 = vrcp.pop %v893
      %v895 = vmul.f32 1.0, %v894
      %v896 = vmul.f32 %v887, %v895
      %898 = vrot.lane.b32.xlu0 %v887, 64
      %v899 = vpop.permute.xlu0 %898
      %v901 = vmul.f32 %v896, %v899
      %vm902 = vcmask 523264
      %v904 = vsel %vm902, %v901, 0
      %906 = vmatprep.subr.mxu0 0.0
      %907 = vmatpush1.msra.mxu0 %v285
      %908 = vmatprep.subr.mxu0 0.0
      %909 = vmatpush1.msra.mxu0 %v286
      %910 = vmatprep.subr.mxu0 0.0
      %911 = vmatpush1.msra.mxu0 %v287
      %912 = vmatprep.subr.mxu0 0.0
      %913 = vmatpush1.msra.mxu0 %v288
      %914 = vmatprep.subr.mxu0 0.0
      %915 = vmatpush1.msra.mxu0 %v289
      %916 = vmatprep.subr.mxu0 0.0
      %917 = vmatpush1.msra.mxu0 %v290
      %918 = vmatprep.subr.mxu0 0.0
      %919 = vmatpush1.msra.mxu0 %v291
      %920 = vmatprep.subr.mxu0 0.0
      %921 = vmatpush1.msra.mxu0 %v292
      %922 = vmatprep.subr.mxu0 0.0
      %923 = vmatpush1.msra.mxu0 0.0
      %924 = vmatprep.subr.mxu0 0.0
      %925 = vmatpush1.msra.mxu0 0.0
      %926 = vmatprep.subr.mxu0 0.0
      %927 = vmatpush1.msra.mxu0 0.0
      %928 = vmatprep.subr.mxu0 0.0
      %929 = vmatpush1.msra.mxu0 0.0
      %930 = vmatprep.subr.mxu0 0.0
      %931 = vmatpush1.msra.mxu0 0.0
      %932 = vmatprep.subr.mxu0 0.0
      %933 = vmatpush1.msra.mxu0 0.0
      %934 = vmatprep.subr.mxu0 0.0
      %935 = vmatpush1.msra.mxu0 0.0
      %936 = vmatprep.subr.mxu0 0.0
      %937 = vmatpush1.msra.mxu0 0.0
      %938 = vmatprep.subr.mxu0 0.0
      %939 = vmatpush1.msra.mxu0 0.0
      %940 = vmatprep.subr.mxu0 0.0
      %941 = vmatpush1.msra.mxu0 0.0
      %942 = vmatprep.subr.mxu0 0.0
      %943 = vmatpush1.msra.mxu0 0.0
      %944 = vmatprep.subr.mxu0 0.0
      %945 = vmatpush1.msra.mxu0 0.0
      %946 = vmatprep.subr.mxu0 0.0
      %947 = vmatpush1.msra.mxu0 0.0
      %948 = vmatprep.subr.mxu0 0.0
      %949 = vmatpush1.msra.mxu0 0.0
      %950 = vmatprep.subr.mxu0 0.0
      %951 = vmatpush1.msra.mxu0 0.0
      %952 = vmatprep.subr.mxu0 0.0
      %953 = vmatpush1.msra.mxu0 0.0
      %954 = vmatprep.subr.mxu0 0.0
      %955 = vmatpush1.msra.mxu0 0.0
      %956 = vmatprep.subr.mxu0 0.0
      %957 = vmatpush1.msra.mxu0 0.0
      %958 = vmatprep.subr.mxu0 0.0
      %959 = vmatpush1.msra.mxu0 0.0
      %960 = vmatprep.subr.mxu0 0.0
      %961 = vmatpush1.msra.mxu0 0.0
      %962 = vmatprep.subr.mxu0 0.0
      %963 = vmatpush1.msra.mxu0 0.0
      %964 = vmatprep.subr.mxu0 0.0
      %965 = vmatpush1.msra.mxu0 0.0
      %966 = vmatprep.subr.mxu0 0.0
      %967 = vmatpush1.msra.mxu0 0.0
      %968 = vmatprep.subr.mxu0 0.0
      %969 = vmatpush1.msra.mxu0 0.0
      %970 = vmatprep.mubr.f32.mxu0 0.0
      %971 = vmatmul.mubr.f32.gmra.mrb[0].mxu0 %v904
      %v972 = vpop.f32.mrb[0].mxu0
      %v973 = vadd.f32 0.0, %v972
      %v974 = vpop.f32.mrb[0].mxu0
      %975 = vdwg.mxu0
      %v976 = vadd.f32 %v799, %v973
      %977 = vst.msk [vmem:[%s268] sm:$0xff] %vm296, %v976
      %p978 = scmp.lt.s32.totalorder %s20, 1
      %s979 = scalar_select %p978, %s20, 1
      %s980 = smul.addr %s979, 8
      %s981 = scalar_lea.vmem %s5, %s980
      // Predicated region
      $region45: #{nano_llama_forward.1} parent=39 // pred_check
        %p982 = pneg %p166
      $region46: #{nano_llama_forward.1} parent=39 // pred_check_branch
        %984 = sbr.rel (%p982) target = $region48
      $region47: #{nano_llama_forward.1} parent=39 // pred_region
        _
      $region48: #{nano_llama_forward.1} parent=39 // pred_fallthru
        _
    $region40: #{nano_llama_forward.1} parent=5 // pred_fallthru
      _
    %p985 = scmp.le.s32.totalorder 2, %s11
    // Predicated region
    $region49: #{nano_llama_forward.1} parent=5 // pred_check
      %p986 = pneg %p985
    $region50: #{nano_llama_forward.1} parent=5 // pred_check_branch
      %988 = sbr.rel (%p986) target = $region52
    $region51: #{nano_llama_forward.1} parent=5 // pred_region
      %s989 = ssub.s32 %s11, 2
      // Predicated region
      $region53: #{nano_llama_forward.1} parent=51 // pred_check
        %p990 = pneg %p172
      $region54: #{nano_llama_forward.1} parent=51 // pred_check_branch
        %992 = sbr.rel (%p990) target = $region56
      $region55: #{nano_llama_forward.1} parent=51 // pred_region
        %p993 = scmp.lt.s32.totalorder %s22, 1
        %s994 = scalar_select %p993, %s22, 1
        %s995 = smul.addr %s994, 8
        %s996 = scalar_lea.vmem %s5, %s995
      $region56: #{nano_llama_forward.1} parent=51 // pred_fallthru
        _
    $region52: #{nano_llama_forward.1} parent=5 // pred_fallthru
      _
  $region6: #{nano_llama_forward.1} parent=0 // loop_footer
    %s15 = sadd.s32 1, %s11
  $region7: #{nano_llama_forward.1} parent=0 // loop_footer_branch
    %10 = sbr.rel target = $region3
  $region8: #{nano_llama_forward.1} parent=0 // loop_exit
    _

</llo_original>
